<compile_context>
chip_gen: v7x
topology: tpu7x:2x2x1
jax: 0.10.0
libtpu: 0.0.40
codegen_flags: <defaults>
</compile_context>

<pallas_src>
import functools

import jax
import jax.numpy as jnp
from jax.experimental import pallas as pl
from jax.experimental.pallas import tpu as pltpu


def _focal_loss_kernel(x_ref, t_ref, a_ref, out_ref, acc_ref, *,
                       gamma, hw, tile_hw, need_mask, use_alpha):
    t_idx = pl.program_id(1)

    @pl.when(t_idx == 0)
    def _():
        acc_ref[...] = jnp.zeros_like(acc_ref)

    x = x_ref[0].astype(jnp.float32)        # (C, TL)  classes on sublanes
    tgt = t_ref[0]                          # (1, TL)  int32 target indices

    # numerically-stable log-sum-exp over the class (sublane) axis
    m = jnp.max(x, axis=0, keepdims=True)                             # (1, TL)
    lse = m + jnp.log(jnp.sum(jnp.exp(x - m), axis=0, keepdims=True))

    # gather target-class logit via one-hot select (no dynamic gather on TPU)
    class_iota = jax.lax.broadcasted_iota(jnp.int32, x.shape, 0)      # (C, TL)
    onehot = class_iota == tgt                                        # (C, TL)
    x_t = jnp.sum(jnp.where(onehot, x, 0.0), axis=0, keepdims=True)   # (1, TL)

    logpt = x_t - lse                                                 # (1, TL)

    if use_alpha:
        a = a_ref[...].astype(jnp.float32)                            # (C, 1)
        at = jnp.sum(jnp.where(onehot, a, 0.0), axis=0, keepdims=True)
        logpt_w = logpt * at
    else:
        logpt_w = logpt

    g = float(gamma)
    if g == 0.0:
        loss = -logpt_w                                 # (1-pt)**0 == 1
    else:
        pt = jnp.exp(logpt)
        omp = jnp.maximum(1.0 - pt, 0.0)                # clamp fp noise pt>1
        if g.is_integer() and 0 < g <= 16:
            focal = omp
            for _ in range(int(g) - 1):
                focal = focal * omp                     # VALU, no EUP pow
        else:
            focal = jnp.power(omp, g)
        loss = -(focal * logpt_w)

    if need_mask:
        lane = jax.lax.broadcasted_iota(jnp.int32, loss.shape, 1)
        valid = (t_idx * tile_hw + lane) < hw
        loss = jnp.where(valid, loss, 0.0)

    # lane-dense vector accumulate; scalar reduce only at the end of this n
    acc_ref[...] += loss

    @pl.when(t_idx == pl.num_programs(1) - 1)
    def _():
        out_ref[...] = jnp.sum(acc_ref[...]).reshape(1, 1, 1)


def _pick_tile_hw(hw, c, itemsize, block_bytes):
    """Lane tile: ~block_bytes of (logits + target) per grid step, mult of 128."""
    per_col = c * itemsize + 4            # one spatial column: C logits + int32
    tile = (block_bytes // per_col) // 128 * 128
    tile = max(tile, 128)
    if hw <= tile:
        return hw                          # full dim -> no alignment constraint
    return tile


def focal_loss(logits_nchw, target_nhw, *, gamma=0.0, alpha=None,
               size_average=True, block_bytes=4 * 1024 * 1024):
    """Pallas implementation of FocalLoss.forward.

    logits_nchw: (N, C, H, W) float logits (f32 or bf16; upcast in-kernel)
    target_nhw:  (N, H, W) int class indices in [0, C)
    """
    N, C, H, W = logits_nchw.shape
    HW = H * W
    M = N * HW

    # NCHW consumed directly: pure metadata reshapes, no transpose / pad.
    x = logits_nchw.reshape(N, C, HW)
    tgt = target_nhw.reshape(N, 1, HW).astype(jnp.int32)

    # alpha handling (mirrors the PyTorch __init__)
    use_alpha = alpha is not None
    if alpha is None:
        alpha_vec = jnp.ones((C, 1), dtype=jnp.float32)
    elif isinstance(alpha, (float, int)):
        assert C == 2, "scalar alpha implies 2 classes"
        alpha_vec = jnp.array([[float(alpha)], [1.0 - float(alpha)]],
                              dtype=jnp.float32)
    else:  # list / array
        alpha_vec = jnp.asarray(alpha, dtype=jnp.float32).reshape(C, 1)

    itemsize = jnp.dtype(logits_nchw.dtype).itemsize
    tile_hw = _pick_tile_hw(HW, C, itemsize, block_bytes)
    grid_hw = pl.cdiv(HW, tile_hw)
    need_mask = (HW % tile_hw) != 0

    kernel = functools.partial(
        _focal_loss_kernel,
        gamma=float(gamma), hw=HW, tile_hw=tile_hw,
        need_mask=need_mask, use_alpha=use_alpha)

    partials = pl.pallas_call(
        kernel,
        out_shape=jax.ShapeDtypeStruct((N, 1, 1), jnp.float32),
        grid_spec=pltpu.PrefetchScalarGridSpec(
            num_scalar_prefetch=0,
            grid=(N, grid_hw),
            in_specs=[
                pl.BlockSpec((1, C, tile_hw), lambda n, t: (n, 0, t)),  # logits
                pl.BlockSpec((1, 1, tile_hw), lambda n, t: (n, 0, t)),  # target
                pl.BlockSpec((C, 1), lambda n, t: (0, 0)),              # alpha
            ],
            out_specs=pl.BlockSpec((1, 1, 1), lambda n, t: (n, 0, 0)),
            scratch_shapes=[pltpu.VMEM((1, tile_hw), jnp.float32)],
        ),
        compiler_params=pltpu.CompilerParams(
            # N parallel -> both TCs on v7x; HW-tile axis carries the reduction.
            dimension_semantics=("parallel", "arbitrary"),
            # ~4 MiB blocks double-buffered (+ acc) ~= 10 MiB; safe on all gens
            # (v5e scoped default is only 16 MiB, v7x physical VMEM is 64 MiB).
            vmem_limit_bytes=32 * 1024 * 1024,
        ),
    )(x, tgt, alpha_vec)

    total = jnp.sum(partials)
    if size_average:
        total = total / jnp.float32(M)
    return total


def focal_loss_ref(logits_nchw, target_nhw, *, gamma=0.0, alpha=None,
                   size_average=True):
    """Pure-JAX reference matching the PyTorch module."""
    N, C, H, W = logits_nchw.shape
    x = jnp.transpose(logits_nchw, (0, 2, 3, 1)).reshape(-1, C).astype(jnp.float32)
    t = target_nhw.reshape(-1).astype(jnp.int32)
    logp = jax.nn.log_softmax(x, axis=-1)
    logpt = jnp.take_along_axis(logp, t[:, None], axis=1)[:, 0]
    pt = jnp.exp(logpt)
    if alpha is not None:
        if isinstance(alpha, (float, int)):
            alpha_vec = jnp.array([alpha, 1.0 - alpha], dtype=jnp.float32)
        else:
            alpha_vec = jnp.asarray(alpha, dtype=jnp.float32)
        logpt = logpt * alpha_vec[t]
    loss = -1.0 * (1.0 - pt) ** float(gamma) * logpt
    return loss.mean() if size_average else loss.sum()


if __name__ == "__main__":
    key = jax.random.PRNGKey(0)
    k1, k2, k3, k4 = jax.random.split(key, 4)

    N, C, H, W = 2, 4, 16, 16
    logits = jax.random.normal(k1, (N, C, H, W), dtype=jnp.float32)
    target = jax.random.randint(k2, (N, H, W), 0, C, dtype=jnp.int32)

    gamma = 2.0
    alpha = [0.1, 0.2, 0.3, 0.4]

    out = focal_loss(logits, target, gamma=gamma, alpha=alpha, size_average=True)
    out = jax.block_until_ready(out)
    ref = focal_loss_ref(logits, target, gamma=gamma, alpha=alpha, size_average=True)
    assert jnp.allclose(out, ref, rtol=1e-5, atol=1e-6), (out, ref)

    # alpha=None / sum-reduction path
    out2 = jax.block_until_ready(
        focal_loss(logits, target, gamma=0.0, alpha=None, size_average=False))
    ref2 = focal_loss_ref(logits, target, gamma=0.0, alpha=None, size_average=False)
    assert jnp.allclose(out2, ref2, rtol=1e-5, atol=1e-4), (out2, ref2)

    # ragged H*W (288 % 128 != 0) with a forced-small tile: exercises the
    # multi-tile accumulator and the in-kernel lane mask (no HBM padding).
    H2, W2 = 16, 18
    logits3 = jax.random.normal(k3, (N, C, H2, W2), dtype=jnp.float32)
    target3 = jax.random.randint(k4, (N, H2, W2), 0, C, dtype=jnp.int32)
    out3 = jax.block_until_ready(
        focal_loss(logits3, target3, gamma=2.0, alpha=alpha,
                   size_average=True, block_bytes=1024))
    ref3 = focal_loss_ref(logits3, target3, gamma=2.0, alpha=alpha,
                          size_average=True)
    assert jnp.allclose(out3, ref3, rtol=1e-5, atol=1e-6), (out3, ref3)

    print("KERNEL_OK")
</pallas_src>

<mosaic_0001>
module attributes {stable_mosaic.version = 11 : i64} {
  func.func @_focal_loss_kernel(%arg0: i32, %arg1: i32, %arg2: memref<1x4x256xf32, #tpu.memory_space<vmem>>, %arg3: memref<1x1x256xi32, #tpu.memory_space<vmem>>, %arg4: memref<4x1xf32, #tpu.memory_space<vmem>>, %arg5: memref<1x1x1xf32, #tpu.memory_space<vmem>>, %arg6: memref<1x256xf32, #tpu.memory_space<vmem>>) attributes {dimension_semantics = [#tpu.dimension_semantics<parallel>, #tpu.dimension_semantics<arbitrary>], iteration_bounds = array<i64: 2, 1>, scalar_prefetch = 0 : i64, scratch_operands = 1 : i64, tpu.core_type = #tpu.core_type<tc>, window_params = [{transform_indices = @transform_0, window_bounds = array<i64: 1, 4, 256>}, {transform_indices = @transform_1, window_bounds = array<i64: 1, 1, 256>}, {pipeline_mode = #tpu.pipeline_mode<synchronous>, transform_indices = @transform_2, window_bounds = array<i64: 4, 1>}, {transform_indices = @transform_3, window_bounds = array<i64: 1, 1, 1>}]} {
    %c0_i32 = arith.constant 0 : i32
    %0 = arith.cmpi eq, %arg1, %c0_i32 : i32
    %1 = arith.extui %0 : i1 to i32
    %c0_i32_0 = arith.constant 0 : i32
    %2 = arith.cmpi ne, %1, %c0_i32_0 : i32
    scf.if %2 {
      %cst_22 = arith.constant 0.000000e+00 : f32
      %47 = vector.broadcast %cst_22 : f32 to vector<1x256xf32>
      %c0_23 = arith.constant 0 : index
      %c0_24 = arith.constant 0 : index
      %48 = vector.load %arg6[%c0_23, %c0_24] : memref<1x256xf32, #tpu.memory_space<vmem>>, vector<1x256xf32>
      tpu.vector_store %arg6[%c0_23, %c0_24], %47 {strides = array<i32>} : memref<1x256xf32, #tpu.memory_space<vmem>>, vector<1x256xf32>,
    } else {
    }
    %c0 = arith.constant 0 : index
    %c0_1 = arith.constant 0 : index
    %c0_2 = arith.constant 0 : index
    %3 = vector.load %arg2[%c0, %c0_1, %c0_2] : memref<1x4x256xf32, #tpu.memory_space<vmem>>, vector<1x4x256xf32>
    %4 = vector.shape_cast %3 : vector<1x4x256xf32> to vector<4x256xf32>
    %c0_3 = arith.constant 0 : index
    %c0_4 = arith.constant 0 : index
    %c0_5 = arith.constant 0 : index
    %5 = vector.load %arg3[%c0_3, %c0_4, %c0_5] : memref<1x1x256xi32, #tpu.memory_space<vmem>>, vector<1x1x256xi32>
    %6 = vector.shape_cast %5 : vector<1x1x256xi32> to vector<1x256xi32>
    %cst = arith.constant dense<0xFF800000> : vector<256xf32>
    %7 = vector.multi_reduction <maximumf>, %4, %cst [0] : vector<4x256xf32> to vector<256xf32>
    %8 = vector.shape_cast %7 : vector<256xf32> to vector<1x256xf32>
    %9 = vector.broadcast %8 : vector<1x256xf32> to vector<4x256xf32>
    %10 = arith.subf %4, %9 : vector<4x256xf32>
    %11 = math.exp %10 : vector<4x256xf32>
    %cst_6 = arith.constant dense<0.000000e+00> : vector<256xf32>
    %12 = vector.multi_reduction <add>, %11, %cst_6 [0] : vector<4x256xf32> to vector<256xf32>
    %13 = vector.shape_cast %12 : vector<256xf32> to vector<1x256xf32>
    %14 = math.log %13 : vector<1x256xf32>
    %15 = arith.addf %8, %14 : vector<1x256xf32>
    %16 = tpu.iota {dimensions = array<i32: 0>} : vector<4x256xi32>
    %17 = vector.broadcast %6 : vector<1x256xi32> to vector<4x256xi32>
    %18 = arith.cmpi eq, %16, %17 : vector<4x256xi32>
    %cst_7 = arith.constant 0.000000e+00 : f32
    %19 = vector.broadcast %cst_7 : f32 to vector<4x256xf32>
    %20 = arith.select %18, %4, %19 : vector<4x256xi1>, vector<4x256xf32>
    %cst_8 = arith.constant dense<0.000000e+00> : vector<256xf32>
    %21 = vector.multi_reduction <add>, %20, %cst_8 [0] : vector<4x256xf32> to vector<256xf32>
    %22 = vector.shape_cast %21 : vector<256xf32> to vector<1x256xf32>
    %23 = arith.subf %22, %15 : vector<1x256xf32>
    %c0_9 = arith.constant 0 : index
    %c0_10 = arith.constant 0 : index
    %24 = vector.load %arg4[%c0_9, %c0_10] : memref<4x1xf32, #tpu.memory_space<vmem>>, vector<4x1xf32>
    %cst_11 = arith.constant 0.000000e+00 : f32
    %25 = vector.shape_cast %24 : vector<4x1xf32> to vector<4x1xf32>
    %26 = vector.broadcast %25 : vector<4x1xf32> to vector<4x256xf32>
    %27 = vector.broadcast %cst_11 : f32 to vector<4x256xf32>
    %28 = arith.select %18, %26, %27 : vector<4x256xi1>, vector<4x256xf32>
    %cst_12 = arith.constant dense<0.000000e+00> : vector<256xf32>
    %29 = vector.multi_reduction <add>, %28, %cst_12 [0] : vector<4x256xf32> to vector<256xf32>
    %30 = vector.shape_cast %29 : vector<256xf32> to vector<1x256xf32>
    %31 = arith.mulf %23, %30 : vector<1x256xf32>
    %32 = math.exp %23 : vector<1x256xf32>
    %cst_13 = arith.constant 1.000000e+00 : f32
    %33 = vector.broadcast %cst_13 : f32 to vector<1x256xf32>
    %34 = arith.subf %33, %32 : vector<1x256xf32>
    %cst_14 = arith.constant 0.000000e+00 : f32
    %35 = vector.broadcast %cst_14 : f32 to vector<1x256xf32>
    %36 = arith.maximumf %34, %35 : vector<1x256xf32>
    %37 = arith.mulf %36, %36 : vector<1x256xf32>
    %38 = arith.mulf %37, %31 : vector<1x256xf32>
    %cst_15 = arith.constant 0.000000e+00 : f32
    %39 = vector.broadcast %cst_15 : f32 to vector<1x256xf32>
    %40 = arith.subf %39, %38 : vector<1x256xf32>
    %c0_16 = arith.constant 0 : index
    %c0_17 = arith.constant 0 : index
    %41 = vector.load %arg6[%c0_16, %c0_17] : memref<1x256xf32, #tpu.memory_space<vmem>>, vector<1x256xf32>
    %42 = arith.addf %41, %40 : vector<1x256xf32>
    %c0_18 = arith.constant 0 : index
    %c0_19 = arith.constant 0 : index
    %43 = vector.load %arg6[%c0_18, %c0_19] : memref<1x256xf32, #tpu.memory_space<vmem>>, vector<1x256xf32>
    tpu.vector_store %arg6[%c0_18, %c0_19], %42 {strides = array<i32>} : memref<1x256xf32, #tpu.memory_space<vmem>>, vector<1x256xf32>,
    %c0_i32_20 = arith.constant 0 : i32
    %44 = arith.cmpi eq, %arg1, %c0_i32_20 : i32
    %45 = arith.extui %44 : i1 to i32
    %c0_i32_21 = arith.constant 0 : i32
    %46 = arith.cmpi ne, %45, %c0_i32_21 : i32
    scf.if %46 {
      %c0_22 = arith.constant 0 : index
      %c0_23 = arith.constant 0 : index
      %47 = vector.load %arg6[%c0_22, %c0_23] : memref<1x256xf32, #tpu.memory_space<vmem>>, vector<1x256xf32>
      %48 = vector.shape_cast %47 : vector<1x256xf32> to vector<1x1x256xf32>
      %cst_24 = arith.constant dense<0.000000e+00> : vector<1xf32>
      %49 = vector.multi_reduction <add>, %48, %cst_24 [1, 2] : vector<1x1x256xf32> to vector<1xf32>
      %50 = vector.shape_cast %49 : vector<1xf32> to vector<1x1x1xf32>
      %51 = vector.extract %50[0, 0, 0] : f32 from vector<1x1x1xf32>
      %52 = vector.broadcast %51 : f32 to vector<1x1x1xf32>
      %c0_25 = arith.constant 0 : index
      %c0_26 = arith.constant 0 : index
      %c0_27 = arith.constant 0 : index
      %53 = vector.load %arg5[%c0_25, %c0_26, %c0_27] : memref<1x1x1xf32, #tpu.memory_space<vmem>>, vector<1x1x1xf32>
      tpu.vector_store %arg5[%c0_25, %c0_26, %c0_27], %52 {strides = array<i32>} : memref<1x1x1xf32, #tpu.memory_space<vmem>>, vector<1x1x1xf32>,
    } else {
    }
    return
  }
  func.func @transform_0(%arg0: i32, %arg1: i32) -> (i32, i32, i32) {
    %c0_i32 = arith.constant 0 : i32
    %c0_i32_0 = arith.constant 0 : i32
    return %arg0, %c0_i32, %arg1 : i32, i32, i32
  }
  func.func @transform_1(%arg0: i32, %arg1: i32) -> (i32, i32, i32) {
    %c0_i32 = arith.constant 0 : i32
    %c0_i32_0 = arith.constant 0 : i32
    return %arg0, %c0_i32, %arg1 : i32, i32, i32
  }
  func.func @transform_2(%arg0: i32, %arg1: i32) -> (i32, i32) {
    %c0_i32 = arith.constant 0 : i32
    %c0_i32_0 = arith.constant 0 : i32
    %c0_i32_1 = arith.constant 0 : i32
    return %c0_i32, %c0_i32_0 : i32, i32
  }
  func.func @transform_3(%arg0: i32, %arg1: i32) -> (i32, i32, i32) {
    %c0_i32 = arith.constant 0 : i32
    %c0_i32_0 = arith.constant 0 : i32
    %c0_i32_1 = arith.constant 0 : i32
    return %arg0, %c0_i32, %c0_i32_0 : i32, i32, i32
  }
}

</mosaic_0001>

<llo_original>
// kernel: tpu_custom_call.1
$region0: #{tpu_custom_call.1}
  #allocation0 [shape = 'u32[]', space=smem, size = 0x4, offset = 0x4, fixed_abs, tag = 'smem constant byte address 0x4 - core index']
  #allocation1 [shape = 'u32[144,128]{1,0:T(1,128)}', space=vmem, size = 0x12000, scoped, tag = 'internal scratch']
  #allocation2 [shape = 'f32[1,256]{1,0:T(1,128)}', space=vmem, size = 0x400, scoped, tag = 'scratch operand']
  %s0 = inlined_call_operand.hbm [shape: f32[2,4,256], index: 0, kind: input, shape index: {}]
  %s1 = inlined_call_operand.vmem [shape: s32[2,1,256], index: 1, kind: input, shape index: {}]
  %s2 = inlined_call_operand.vmem [shape: f32[4,1], index: 2, kind: input, shape index: {}]
  %s3 = inlined_call_operand.vmem [shape: f32[2,1,1], index: 3, kind: output, shape index: {}]
  %s4 = sld [smem:[#allocation0]]
  $region57: #{tpu_custom_call.1} parent=0
    _
  %s6 = ssub.s32 1, %s4
  %s7 = scalar_select 0, %s6, %s4
  $region1: #{tpu_custom_call.1} parent=0
    #allocation3 [shape = 'u8[8192]{0}', space=vmem, size = 0x2000, scoped, tag = 'input window, operand 0']
    #allocation4 [shape = 's32[2]{0}', space=sflag, size = 0x8, scoped, tag = 'scoped memory for tpu_custom_call.1']
    %8 = vsyncpa [#allocation4], 0
    %s9 = scalar_lea.sflag [#allocation4], 1
    %10 = vsyncpa %s9, 0
    loop: start=0, step=1, limit=4
    $region2: #{tpu_custom_call.1} parent=1 // loop_pre_header
      _
    $region3: #{tpu_custom_call.1} parent=1 // loop_header
      %s12 = sphi 0, %s16
      %p13 = scmp.ge.s32.totalorder %s12, 4
      %s19 = sphi 0, %s31
      %s20 = sphi 0, %s27
      %s21 = sphi 0, %s19
      %s22 = sphi 0, %s20
      %s23 = sphi 0, %s21
      %s24 = sphi 0, %s22
      %s36 = sphi 0, %s38
      %s39 = sphi 0, %s36
      %s40 = sphi 0, %s39
      %s56 = sphi 0, %s40
      %s64 = sphi 0, %s66
      %s67 = sphi 0, %s64
      %s68 = sphi 0, %s67
      %s84 = sphi 0, %s68
      %s88 = sphi 0, %s88
      %s90 = sphi 0, %s88
      %s91 = sphi 0, %s90
      %s105 = sphi 0, %s91
      %s111 = sphi 0, %s113
      %s114 = sphi 0, %s111
      %s115 = sphi 0, %s114
      %s131 = sphi 0, %s115
    $region4: #{tpu_custom_call.1} parent=1 // loop_header_branch
      %15 = sbr.rel (%p13) target = $region8
    $region5: #{tpu_custom_call.1} parent=1 // loop_body
      %s17 = ssub.s32 %s12, 1
      %s18 = ssub.s32 %s12, 2
      %s25 = sadd.s32 1, %s20
      %p26 = scmp.ge.s32.totalorder %s25, 1
      %s27 = scalar_select %p26, 0, %s25
      %s28 = sadd.s32 1, %s19
      %s29 = scalar_select %p26, %s28, %s19
      %p30 = scmp.ge.s32.totalorder %s29, 2
      %s31 = scalar_select %p30, 0, %s29
      %s32 = ssub.s32 %s19, %s31
      %s33 = ssub.s32 %s20, %s27
      %s34 = sor.u32 %s32, %s33
      %p35 = scmp.eq.s32.totalorder %s34, 0
      %s37 = sadd.s32 %s36, 1
      %s38 = scalar_select %p35, %s36, %s37
      %p41 = pneg %p35
      %p42 = scmp.eq.s32.totalorder %s12, 1
      %p43 = por %p41, %p42
      %p44 = scmp.ne.s32.totalorder %s36, %s39
      %p45 = scmp.eq.s32.totalorder %s12, 0
      %p46 = por %p44, %p45
      %p47 = scmp.ne.s32.totalorder %s36, %s39
      %p48 = scmp.eq.s32.totalorder %s17, 1
      %p49 = por %p47, %p48
      %p50 = scmp.ne.s32.totalorder %s39, %s40
      %p51 = scmp.eq.s32.totalorder %s17, 0
      %p52 = por %p50, %p51
      %p53 = scmp.ne.s32.totalorder %s39, %s40
      %p54 = scmp.eq.s32.totalorder %s18, 1
      %p55 = por %p53, %p54
      %p57 = scmp.ne.s32.totalorder %s40, %s56
      %p58 = scmp.eq.s32.totalorder %s18, 0
      %p59 = por %p57, %p58
      %s60 = ssub.s32 %s19, %s31
      %s61 = ssub.s32 %s20, %s27
      %s62 = sor.u32 %s60, %s61
      %p63 = scmp.eq.s32.totalorder %s62, 0
      %s65 = sadd.s32 %s64, 1
      %s66 = scalar_select %p63, %s64, %s65
      %p69 = pneg %p63
      %p70 = scmp.eq.s32.totalorder %s12, 1
      %p71 = por %p69, %p70
      %p72 = scmp.ne.s32.totalorder %s64, %s67
      %p73 = scmp.eq.s32.totalorder %s12, 0
      %p74 = por %p72, %p73
      %p75 = scmp.ne.s32.totalorder %s64, %s67
      %p76 = scmp.eq.s32.totalorder %s17, 1
      %p77 = por %p75, %p76
      %p78 = scmp.ne.s32.totalorder %s67, %s68
      %p79 = scmp.eq.s32.totalorder %s17, 0
      %p80 = por %p78, %p79
      %p81 = scmp.ne.s32.totalorder %s67, %s68
      %p82 = scmp.eq.s32.totalorder %s18, 1
      %p83 = por %p81, %p82
      %p85 = scmp.ne.s32.totalorder %s68, %s84
      %p86 = scmp.eq.s32.totalorder %s18, 0
      %p87 = por %p85, %p86
      %s89 = sadd.s32 %s88, 1
      %p92 = scmp.eq.s32.totalorder %s12, 1
      %p93 = scmp.ne.s32.totalorder %s88, %s90
      %p94 = scmp.eq.s32.totalorder %s12, 0
      %p95 = por %p93, %p94
      %p96 = scmp.ne.s32.totalorder %s88, %s90
      %p97 = scmp.eq.s32.totalorder %s17, 1
      %p98 = por %p96, %p97
      %p99 = scmp.ne.s32.totalorder %s90, %s91
      %p100 = scmp.eq.s32.totalorder %s17, 0
      %p101 = por %p99, %p100
      %p102 = scmp.ne.s32.totalorder %s90, %s91
      %p103 = scmp.eq.s32.totalorder %s18, 1
      %p104 = por %p102, %p103
      %p106 = scmp.ne.s32.totalorder %s91, %s105
      %p107 = scmp.eq.s32.totalorder %s18, 0
      %p108 = por %p106, %p107
      %s109 = ssub.s32 %s19, %s31
      %p110 = scmp.eq.s32.totalorder %s109, 0
      %s112 = sadd.s32 %s111, 1
      %s113 = scalar_select %p110, %s111, %s112
      %p116 = pneg %p110
      %p117 = scmp.eq.s32.totalorder %s12, 1
      %p118 = por %p116, %p117
      %p119 = scmp.ne.s32.totalorder %s111, %s114
      %p120 = scmp.eq.s32.totalorder %s12, 0
      %p121 = por %p119, %p120
      %p122 = scmp.ne.s32.totalorder %s111, %s114
      %p123 = scmp.eq.s32.totalorder %s17, 1
      %p124 = por %p122, %p123
      %p125 = scmp.ne.s32.totalorder %s114, %s115
      %p126 = scmp.eq.s32.totalorder %s17, 0
      %p127 = por %p125, %p126
      %p128 = scmp.ne.s32.totalorder %s114, %s115
      %p129 = scmp.eq.s32.totalorder %s18, 1
      %p130 = por %p128, %p129
      %p132 = scmp.ne.s32.totalorder %s115, %s131
      %p133 = scmp.eq.s32.totalorder %s18, 0
      %p134 = por %p132, %p133
      %p135 = scmp.le.s32.totalorder 1, %s12
      %p136 = scmp.lt.s32.totalorder %s12, 3
      %p137 = pnand %p135, %p136
      %p138 = pneg %p137
      // Predicated region
      $region9: #{tpu_custom_call.1} parent=5 // pred_check
        _
      $region10: #{tpu_custom_call.1} parent=5 // pred_check_branch
        %140 = sbr.rel (%p137) target = $region12
      $region11: #{tpu_custom_call.1} parent=5 // pred_region
        %s141 = ssub.s32 %s12, 1
        // Predicated region
        $region13: #{tpu_custom_call.1} parent=11 // pred_check
          %p142 = pneg %p101
        $region14: #{tpu_custom_call.1} parent=11 // pred_check_branch
          %144 = sbr.rel (%p142) target = $region16
        $region15: #{tpu_custom_call.1} parent=11 // pred_region
          _
        $region16: #{tpu_custom_call.1} parent=11 // pred_fallthru
          _
      $region12: #{tpu_custom_call.1} parent=5 // pred_fallthru
        _
      %p145 = scmp.lt.s32.totalorder %s12, 2
      // Predicated region
      $region17: #{tpu_custom_call.1} parent=5 // pred_check
        %p146 = pneg %p145
      $region18: #{tpu_custom_call.1} parent=5 // pred_check_branch
        %148 = sbr.rel (%p146) target = $region20
      $region19: #{tpu_custom_call.1} parent=5 // pred_region
        // Predicated region
        $region21: #{tpu_custom_call.1} parent=19 // pred_check
          %p149 = pneg %p46
        $region22: #{tpu_custom_call.1} parent=19 // pred_check_branch
          %151 = sbr.rel (%p149) target = $region24
        $region23: #{tpu_custom_call.1} parent=19 // pred_region
          %s152 = sand.u32 %s36, 1
          %s153 = scalar_lea.sflag [#allocation4], %s152
          %s154 = sand.u32 %s36, 1
          %s155 = smul.addr %s154, 8
          %s156 = scalar_lea.vmem [#allocation3], %s155
          %s157 = smul.u32 2, %s20
          %s159 = ssub.s32 128, 128
          %160 = vsyncadd %s153, %s159
          %s161 = smul.addr %s19, 2
          %s162 = sadd.s32 %s157, %s161
          %s163 = smul.addr %s162, 64
          %s164 = scalar_lea.hbm %s0, %s163
          %s166 = sshll.u32 %s156, 4
          %s167 = int_to_ptr.vmem [resolvable:$true] %s166
          %169 = dma.hbm_to_vmem [thread:$0]  %s164, 128, %s167, %s153
        $region24: #{tpu_custom_call.1} parent=19 // pred_fallthru
          _
        // Predicated region
        $region25: #{tpu_custom_call.1} parent=19 // pred_check
          %p170 = pneg %p74
        $region26: #{tpu_custom_call.1} parent=19 // pred_check_branch
          %172 = sbr.rel (%p170) target = $region28
        $region27: #{tpu_custom_call.1} parent=19 // pred_region
          %s173 = smul.u32 2, %s20
          %p174 = scmp.lt.s32.totalorder %s19, 1
          %s175 = scalar_select %p174, %s19, 1
          %p176 = scmp.lt.s32.totalorder %s173, 1
          %s177 = scalar_select %p176, %s173, 1
          %s178 = smul.addr %s175, 2
          %s179 = sadd.s32 %s177, %s178
          %s180 = scalar_lea.vmem %s1, %s179
          %s181 = smul.u32 2, %s20
        $region28: #{tpu_custom_call.1} parent=19 // pred_fallthru
          _
      $region20: #{tpu_custom_call.1} parent=5 // pred_fallthru
        _
      %p182 = scmp.le.s32.totalorder 1, %s12
      %p183 = scmp.lt.s32.totalorder %s12, 3
      %p184 = pnand %p182, %p183
      %p185 = pneg %p184
      // Predicated region
      $region29: #{tpu_custom_call.1} parent=5 // pred_check
        _
      $region30: #{tpu_custom_call.1} parent=5 // pred_check_branch
        %187 = sbr.rel (%p184) target = $region32
      $region31: #{tpu_custom_call.1} parent=5 // pred_region
        %s188 = ssub.s32 %s12, 1
        %s189 = sand.u32 %s39, 1
        %s190 = scalar_lea.sflag [#allocation4], %s189
        %s191 = sand.u32 %s39, 1
        %s192 = smul.addr %s191, 8
        %s193 = scalar_lea.vmem [#allocation3], %s192
        // Predicated region
        $region33: #{tpu_custom_call.1} parent=31 // pred_check
          %p194 = pneg %p52
        $region34: #{tpu_custom_call.1} parent=31 // pred_check_branch
          %196 = sbr.rel (%p194) target = $region36
        $region35: #{tpu_custom_call.1} parent=31 // pred_region
          %197 = dma.done %s190, 128
        $region36: #{tpu_custom_call.1} parent=31 // pred_fallthru
          _
        %s198 = sand.u32 %s39, 1
        %s199 = scalar_lea.sflag [#allocation4], %s198
        %s200 = sand.u32 %s39, 1
        %s201 = smul.addr %s200, 8
        %s202 = scalar_lea.vmem [#allocation3], %s201
        %p203 = pneg %p52
        %p204 = pneg %p49
        %s205 = smul.u32 2, %s22
        %p206 = scmp.lt.s32.totalorder %s21, 1
        %s207 = scalar_select %p206, %s21, 1
        %p208 = scmp.lt.s32.totalorder %s205, 1
        %s209 = scalar_select %p208, %s205, 1
        %s210 = smul.addr %s207, 2
        %s211 = sadd.s32 %s209, %s210
        %s212 = scalar_lea.vmem %s1, %s211
        %p213 = pneg %p80
        %p214 = pneg %p77
        %p215 = pneg %p101
        %p216 = pneg %p98
        %p217 = pneg %p127
        %p218 = pneg %p124
        %p219 = scmp.lt.s32.totalorder %s21, 1
        %s220 = scalar_select %p219, %s21, 1
        %s221 = scalar_lea.vmem %s3, %s220
        %s222 = smul.u32 2, %s22
        %s223 = smul.u32 2, %s22
        %p224 = scmp.lt.s32.totalorder %s21, 1
        %s225 = scalar_select %p224, %s21, 1
        %p226 = scmp.lt.s32.totalorder %s223, 1
        %s227 = scalar_select %p226, %s223, 1
        %s228 = smul.addr %s225, 2
        %s229 = sadd.s32 %s227, %s228
        %s230 = scalar_lea.vmem %s1, %s229
        %s231 = smul.u32 2, %s22
        %p232 = scmp.lt.s32.totalorder %s21, 1
        %s233 = scalar_select %p232, %s21, 1
        %s234 = scalar_lea.vmem %s3, %s233
        %p235 = scmp.eq.s32.totalorder %s22, 0
        // Predicated region
        $region37: #{tpu_custom_call.1} parent=31 // pred_check
          %p236 = pneg %p235
        $region38: #{tpu_custom_call.1} parent=31 // pred_check_branch
          %238 = sbr.rel (%p236) target = $region40
        $region39: #{tpu_custom_call.1} parent=31 // pred_region
          %v239 = vlaneseq
          %vm240 = vcmp.ge.s32.totalorder %v239, 0
          %vm241 = vcmp.lt.s32.totalorder %v239, 256
          %vm242 = vmand %vm240, %vm241
          %243 = vst.msk [vmem:[#allocation2] sm:$0x3] %vm242, 0.0
        $region40: #{tpu_custom_call.1} parent=31 // pred_fallthru
          _
        %v244 = vld [vmem:[%s193] sm:$0xff]
        %v245 = vld [vmem:[%s230] sm:$0x3]
        %v247 = vcombine.high %v244, %v244
        %vm249 = vcmask 1043456
        %v250 = vsel %vm249, %v244, -inf
        %v251 = vrot.slane %v250, 4
        %v252 = vmax.f32 %v250, %v251
        %v253 = vrot.slane %v252, 2
        %v254 = vmax.f32 %v252, %v253
        %v255 = vrot.slane %v254, 1
        %v256 = vmax.f32 %v254, %v255
        %v257 = vsel %vm249, %v247, -inf
        %v258 = vrot.slane %v257, 4
        %v259 = vmax.f32 %v257, %v258
        %v260 = vrot.slane %v259, 2
        %v261 = vmax.f32 %v259, %v260
        %v262 = vrot.slane %v261, 1
        %v263 = vmax.f32 %v261, %v262
        %v266 = vcombine.low %v256, %v263
        %v268 = vsub.f32 %v244, %v266
        %v269 = vmul.f32 %v268, 1.442695
        %v270 = vpow.pop %v269
        %v272 = vcombine.high %v270, %v270
        %v274 = vsel %vm249, %v270, 0.0
        %v275 = vrot.slane %v274, 4
        %v276 = vadd.f32 %v274, %v275
        %v277 = vrot.slane %v276, 2
        %v278 = vadd.f32 %v276, %v277
        %v279 = vrot.slane %v278, 1
        %v280 = vadd.f32 %v278, %v279
        %v281 = vsel %vm249, %v272, 0.0
        %v282 = vrot.slane %v281, 4
        %v283 = vadd.f32 %v281, %v282
        %v284 = vrot.slane %v283, 2
        %v285 = vadd.f32 %v283, %v284
        %v286 = vrot.slane %v285, 1
        %v287 = vadd.f32 %v285, %v286
        %v288 = vlog2.pop %v280
        %v289 = vmul.f32 %v288, 0.6931472
        %v290 = vlog2.pop %v287
        %v291 = vmul.f32 %v290, 0.6931472
        %v292 = vadd.f32 %v256, %v289
        %v293 = vadd.f32 %v263, %v291
        %v294 = vlaneseq
        %v295 = vshrl.u32 %v294, 7
        %v296 = vlaneseq
        %v297 = vshrl.u32 %v296, 7
        %v298 = vsub.s32 0, %v297
        %v299 = vrot.slane %v245, %v298
        %v300 = vlaneseq
        %v301 = vshrl.u32 %v300, 7
        %v302 = vsub.s32 1, %v301
        %v303 = vrot.slane %v245, %v302
        %vm304 = vcmp.eq.s32.totalorder %v295, %v299
        %vm305 = vcmp.eq.s32.totalorder %v295, %v303
        %v306 = vsel %vm304, %v244, 0.0
        %v307 = vsel %vm305, %v247, 0.0
        %v308 = vsel %vm249, %v306, 0.0
        %v309 = vrot.slane %v308, 4
        %v310 = vadd.f32 %v308, %v309
        %v311 = vrot.slane %v310, 2
        %v312 = vadd.f32 %v310, %v311
        %v313 = vrot.slane %v312, 1
        %v314 = vadd.f32 %v312, %v313
        %v315 = vsel %vm249, %v307, 0.0
        %v316 = vrot.slane %v315, 4
        %v317 = vadd.f32 %v315, %v316
        %v318 = vrot.slane %v317, 2
        %v319 = vadd.f32 %v317, %v318
        %v320 = vrot.slane %v319, 1
        %v321 = vadd.f32 %v319, %v320
        %v322 = vsub.f32 %v314, %v292
        %v323 = vsub.f32 %v321, %v293
        %v324 = vld [vmem:[%s2] sm:$0xf]
        %326 = vset.pattern.permute.xlu0 0
        %327 = vperm.xlu0 %326, %v324
        %v328 = vpop.permute.xlu0 %327
        %v330 = vsel %vm304, %v328, 0.0
        %v331 = vsel %vm305, %v328, 0.0
        %v332 = vsel %vm249, %v330, 0.0
        %v333 = vrot.slane %v332, 4
        %v334 = vadd.f32 %v332, %v333
        %v335 = vrot.slane %v334, 2
        %v336 = vadd.f32 %v334, %v335
        %v337 = vrot.slane %v336, 1
        %v338 = vadd.f32 %v336, %v337
        %v339 = vsel %vm249, %v331, 0.0
        %v340 = vrot.slane %v339, 4
        %v341 = vadd.f32 %v339, %v340
        %v342 = vrot.slane %v341, 2
        %v343 = vadd.f32 %v341, %v342
        %v344 = vrot.slane %v343, 1
        %v345 = vadd.f32 %v343, %v344
        %v346 = vmul.f32 %v322, %v338
        %v347 = vmul.f32 %v323, %v345
        %v348 = vmul.f32 %v322, 1.442695
        %v349 = vpow.pop %v348
        %v350 = vmul.f32 %v323, 1.442695
        %v351 = vpow.pop %v350
        %v352 = vsub.f32 1.0, %v349
        %v353 = vsub.f32 1.0, %v351
        %v354 = vmax.f32 %v352, 0.0
        %v355 = vmax.f32 %v353, 0.0
        %v356 = vmul.f32 %v354, %v354
        %v357 = vmul.f32 %v355, %v355
        %v358 = vmul.f32 %v356, %v346
        %v359 = vmul.f32 %v357, %v347
        %v360 = vsub.f32 0.0, %v358
        %v361 = vsub.f32 0.0, %v359
        %v362 = vld [vmem:[#allocation2] sm:$0x3]
        %v365 = vcombine.low %v360, %v361
        %v367 = vunpack.c.l.s4 1966171168
        %v368 = vunpack.c.0.s8 %v367
        %v369 = vlaneseq
        %v370 = vshrl.u32 %v369, 7
        %v371 = vsub.s32 %v368, %v370
        %v372 = vrot.slane %v365, %v371
        %v374 = vunpack.c.l.s4 1966171168
        %v375 = vunpack.c.0.s8 %v374
        %v376 = vlaneseq
        %v377 = vshrl.u32 %v376, 7
        %v378 = vsub.s32 %v375, %v377
        %v379 = vrot.slane %v372, %v378
        %v381 = vadd.f32 %v362, %v379
        %v382 = vlaneseq
        %vm383 = vcmp.ge.s32.totalorder %v382, 0
        %vm384 = vcmp.lt.s32.totalorder %v382, 256
        %vm385 = vmand %vm383, %vm384
        %386 = vst.msk [vmem:[#allocation2] sm:$0x3] %vm385, %v381
        // Predicated region
        $region41: #{tpu_custom_call.1} parent=31 // pred_check
          %p387 = pneg %p235
        $region42: #{tpu_custom_call.1} parent=31 // pred_check_branch
          %389 = sbr.rel (%p387) target = $region44
        $region43: #{tpu_custom_call.1} parent=31 // pred_region
          %v390 = vld [vmem:[#allocation2] sm:$0x3]
          %v392 = vlaneseq
          %v393 = vshrl.u32 %v392, 7
          %v394 = vsub.s32 0, %v393
          %v395 = vrot.slane %v390, %v394
          %v396 = vlaneseq
          %v397 = vshrl.u32 %v396, 7
          %v398 = vsub.s32 1, %v397
          %v399 = vrot.slane %v390, %v398
          %vm402 = vcmask 1040384
          %v403 = vsel %vm402, %v395, 0.0
          %v404 = vsel %vm402, %v399, 0.0
          %v405 = vadd.f32 %v403, %v404
          %406 = vadd.xlane.f32.xlu0 %v405
          %v407 = vpop.xlane.xlu0 %406
          %v408 = vrot.slane %v407, 4
          %v409 = vadd.f32 %v407, %v408
          %v410 = vrot.slane %v409, 2
          %v411 = vadd.f32 %v409, %v410
          %v412 = vrot.slane %v411, 1
          %v413 = vadd.f32 %v411, %v412
          %s414 = vtos %v413
          %v415 = vstv %s414
          %vm416 = vcmask 0
          %417 = vst.msk [vmem:[%s234] sm:$0x1] %vm416, %v415
        $region44: #{tpu_custom_call.1} parent=31 // pred_fallthru
          _
        %p418 = scmp.lt.s32.totalorder %s21, 1
        %s419 = scalar_select %p418, %s21, 1
        %s420 = scalar_lea.vmem %s3, %s419
        // Predicated region
        $region45: #{tpu_custom_call.1} parent=31 // pred_check
          %p421 = pneg %p124
        $region46: #{tpu_custom_call.1} parent=31 // pred_check_branch
          %423 = sbr.rel (%p421) target = $region48
        $region47: #{tpu_custom_call.1} parent=31 // pred_region
          _
        $region48: #{tpu_custom_call.1} parent=31 // pred_fallthru
          _
      $region32: #{tpu_custom_call.1} parent=5 // pred_fallthru
        _
      %p424 = scmp.le.s32.totalorder 2, %s12
      // Predicated region
      $region49: #{tpu_custom_call.1} parent=5 // pred_check
        %p425 = pneg %p424
      $region50: #{tpu_custom_call.1} parent=5 // pred_check_branch
        %427 = sbr.rel (%p425) target = $region52
      $region51: #{tpu_custom_call.1} parent=5 // pred_region
        %s428 = ssub.s32 %s12, 2
        // Predicated region
        $region53: #{tpu_custom_call.1} parent=51 // pred_check
          %p429 = pneg %p130
        $region54: #{tpu_custom_call.1} parent=51 // pred_check_branch
          %431 = sbr.rel (%p429) target = $region56
        $region55: #{tpu_custom_call.1} parent=51 // pred_region
          %p432 = scmp.lt.s32.totalorder %s23, 1
          %s433 = scalar_select %p432, %s23, 1
          %s434 = scalar_lea.vmem %s3, %s433
        $region56: #{tpu_custom_call.1} parent=51 // pred_fallthru
          _
      $region52: #{tpu_custom_call.1} parent=5 // pred_fallthru
        _
    $region6: #{tpu_custom_call.1} parent=1 // loop_footer
      %s16 = sadd.s32 1, %s12
    $region7: #{tpu_custom_call.1} parent=1 // loop_footer_branch
      %11 = sbr.rel target = $region3
    $region8: #{tpu_custom_call.1} parent=1 // loop_exit
      _
    %435 = vsyncpa [#allocation4], 1
    %s436 = scalar_lea.sflag [#allocation4], 1
    %437 = vsyncpa %s436, 1

</llo_original>
